<compile_context>
chip_gen: v5e
topology: v5e:2x2
jax: 0.10.0
libtpu: 0.0.40
codegen_flags: <defaults>
</compile_context>

<pallas_src>
import jax
import jax.numpy as jnp
from jax.experimental import pallas as pl
from jax.experimental.pallas import tpu as pltpu


def _round_up(x, m):
    return (x + m - 1) // m * m


def critic_kernel(x_ref, w1_ref, b1_ref, w2_ref, b2_ref, w3_ref, b3_ref, out_ref):
    x = x_ref[...]                                                    # (TB, Kp) bf16

    # fc1 + ReLU  (MXU, f32 accumulate; bias add / ReLU full-lane on the VPU)
    h1 = jnp.dot(x, w1_ref[...], preferred_element_type=jnp.float32) + b1_ref[...]
    h1 = jnp.maximum(h1, 0.0)

    # fc2 + ReLU
    h2 = jnp.dot(h1.astype(w2_ref.dtype), w2_ref[...],
                 preferred_element_type=jnp.float32) + b2_ref[...]
    h2 = jnp.maximum(h2, 0.0)

    # fc3: one output column -> VPU multiply + XLU lane reduction, not the MXU.
    q = jnp.sum(h2 * w3_ref[...], axis=-1, keepdims=True) + b3_ref[0, 0]
    out_ref[...] = q.astype(out_ref.dtype)


def _pick_batch_tile(batch):
    # >=128 (MXU M), bigger when the batch is large enough to amortize the
    # ~0.35us/step grid overhead; activations stay tiny so VMEM is never tight.
    if batch <= 128:
        return 128
    if batch <= 1024:
        return 256
    return 512


def critic_forward(obs, act, kparams):
    """obs: (B, obs_dim) f32, act: (B, act_dim) f32 -> (B, 1) f32."""
    w1, b1, w2, b2, w3, b3 = kparams
    B, obs_dim = obs.shape
    act_dim = act.shape[1]
    K_pad, H_pad = w1.shape

    TB = _pick_batch_tile(B)
    B_pad = _round_up(B, TB)

    # Concat + lane-pad the fc1 input once in the wrapper (cheap XLA op).
    x = jnp.zeros((B_pad, K_pad), jnp.bfloat16)
    x = x.at[:B, :obs_dim].set(obs.astype(jnp.bfloat16))
    x = x.at[:B, obs_dim:obs_dim + act_dim].set(act.astype(jnp.bfloat16))

    grid = (B_pad // TB,)

    flops = 2 * B_pad * (K_pad * H_pad + H_pad * H_pad + H_pad)
    bytes_accessed = (x.size * 2 + w1.size * 2 + w2.size * 2
                      + (b1.size + b2.size + w3.size + b3.size) * 4
                      + B_pad * 4)

    out = pl.pallas_call(
        critic_kernel,
        out_shape=jax.ShapeDtypeStruct((B_pad, 1), jnp.float32),
        grid=grid,
        in_specs=[
            pl.BlockSpec((TB, K_pad), lambda i: (i, 0)),        # x tile (pipelined)
            pl.BlockSpec((K_pad, H_pad), lambda i: (0, 0)),     # w1 (VMEM-resident)
            pl.BlockSpec((1, H_pad), lambda i: (0, 0)),         # b1
            pl.BlockSpec((H_pad, H_pad), lambda i: (0, 0)),     # w2
            pl.BlockSpec((1, H_pad), lambda i: (0, 0)),         # b2
            pl.BlockSpec((1, H_pad), lambda i: (0, 0)),         # w3 as a row vector
            pl.BlockSpec(memory_space=pltpu.MemorySpace.SMEM),  # b3 scalar
        ],
        out_specs=pl.BlockSpec((TB, 1), lambda i: (i, 0)),
        compiler_params=pltpu.CompilerParams(
            dimension_semantics=("parallel",),
            vmem_limit_bytes=32 * 1024 * 1024),
        cost_estimate=pl.CostEstimate(
            flops=flops, transcendentals=0, bytes_accessed=bytes_accessed),
    )(x, w1, b1, w2, b2, w3, b3)

    return out[:B]


def init_params(key, obs_dim, act_dim, hidden_size):
    """PyTorch-Linear-style init (uniform +-1/sqrt(fan_in)), weights pre-transposed
    to (in, out), then zero-padded to 128-lane multiples and cast to bf16 where
    they feed the MXU. Returns (kernel_params, full_f32_params_for_reference)."""
    k1, k2, k3, k4, k5, k6 = jax.random.split(key, 6)
    in1 = obs_dim + act_dim

    def u(k, shape, fan_in):
        bound = 1.0 / jnp.sqrt(jnp.float32(fan_in))
        return jax.random.uniform(k, shape, jnp.float32, -bound, bound)

    w1 = u(k1, (in1, hidden_size), in1)
    b1 = u(k2, (1, hidden_size), in1)
    w2 = u(k3, (hidden_size, hidden_size), hidden_size)
    b2 = u(k4, (1, hidden_size), hidden_size)
    w3 = u(k5, (hidden_size, 1), hidden_size)
    b3 = u(k6, (1, 1), hidden_size)

    K_pad = _round_up(in1, 128)
    H_pad = _round_up(hidden_size, 128)

    w1_p = jnp.zeros((K_pad, H_pad), jnp.float32).at[:in1, :hidden_size].set(w1)
    b1_p = jnp.zeros((1, H_pad), jnp.float32).at[:, :hidden_size].set(b1)
    w2_p = jnp.zeros((H_pad, H_pad), jnp.float32).at[:hidden_size, :hidden_size].set(w2)
    b2_p = jnp.zeros((1, H_pad), jnp.float32).at[:, :hidden_size].set(b2)
    w3_p = jnp.zeros((1, H_pad), jnp.float32).at[:, :hidden_size].set(w3[:, 0])
    b3_p = b3                                   # (1, 1) scalar -> SMEM

    kernel_params = (w1_p.astype(jnp.bfloat16), b1_p,
                     w2_p.astype(jnp.bfloat16), b2_p,
                     w3_p, b3_p)
    full_params = (w1, b1, w2, b2, w3, b3)
    return kernel_params, full_params


def reference_forward(obs, act, full_params):
    """Plain-JAX f32 reference matching the PyTorch forward exactly."""
    w1, b1, w2, b2, w3, b3 = full_params
    x = jnp.concatenate([obs, act], axis=1)
    h1 = jnp.maximum(x @ w1 + b1, 0.0)
    h2 = jnp.maximum(h1 @ w2 + b2, 0.0)
    return h2 @ w3 + b3


if __name__ == "__main__":
    obs_dim, act_dim, hidden_size = 16, 8, 32
    batch = 4

    key = jax.random.PRNGKey(0)
    k_obs, k_act, k_param = jax.random.split(key, 3)

    obs = jax.random.normal(k_obs, (batch, obs_dim), jnp.float32)
    act = jax.random.normal(k_act, (batch, act_dim), jnp.float32)

    kparams, full_params = init_params(k_param, obs_dim, act_dim, hidden_size)

    out = critic_forward(obs, act, kparams)
    out = jax.block_until_ready(out)

    ref = reference_forward(obs, act, full_params)
    assert out.shape == (batch, 1)
    # bf16 matmul operands with f32 accumulation: tolerance relaxed vs pure f32.
    assert jnp.allclose(out, ref, atol=5e-2, rtol=5e-2), (out, ref)

    print("KERNEL_OK")
</pallas_src>

<mosaic_0001>
module attributes {stable_mosaic.version = 11 : i64} {
  func.func @critic_kernel(%arg0: i32, %arg1: memref<128x128xbf16, #tpu.memory_space<vmem>>, %arg2: memref<128x128xbf16, #tpu.memory_space<vmem>>, %arg3: memref<1x128xf32, #tpu.memory_space<vmem>>, %arg4: memref<128x128xbf16, #tpu.memory_space<vmem>>, %arg5: memref<1x128xf32, #tpu.memory_space<vmem>>, %arg6: memref<1x128xf32, #tpu.memory_space<vmem>>, %arg7: memref<1x1xf32, #tpu.memory_space<smem>>, %arg8: memref<128x1xf32, #tpu.memory_space<vmem>>) attributes {dimension_semantics = [#tpu.dimension_semantics<parallel>], iteration_bounds = array<i64: 1>, scalar_prefetch = 0 : i64, scratch_operands = 0 : i64, tpu.core_type = #tpu.core_type<tc>, window_params = [{transform_indices = @transform_0, window_bounds = array<i64: 128, 128>}, {pipeline_mode = #tpu.pipeline_mode<synchronous>, transform_indices = @transform_1, window_bounds = array<i64: 128, 128>}, {pipeline_mode = #tpu.pipeline_mode<synchronous>, transform_indices = @transform_2, window_bounds = array<i64: 1, 128>}, {pipeline_mode = #tpu.pipeline_mode<synchronous>, transform_indices = @transform_3, window_bounds = array<i64: 128, 128>}, {pipeline_mode = #tpu.pipeline_mode<synchronous>, transform_indices = @transform_4, window_bounds = array<i64: 1, 128>}, {pipeline_mode = #tpu.pipeline_mode<synchronous>, transform_indices = @transform_5, window_bounds = array<i64: 1, 128>}, {transform_indices = @transform_6, window_bounds = array<i64: 1, 1>}, {transform_indices = @transform_7, window_bounds = array<i64: 128, 1>}]} {
    %c0 = arith.constant 0 : index
    %c0_0 = arith.constant 0 : index
    %0 = vector.load %arg1[%c0, %c0_0] : memref<128x128xbf16, #tpu.memory_space<vmem>>, vector<128x128xbf16>
    %c0_1 = arith.constant 0 : index
    %c0_2 = arith.constant 0 : index
    %1 = vector.load %arg2[%c0_1, %c0_2] : memref<128x128xbf16, #tpu.memory_space<vmem>>, vector<128x128xbf16>
    %cst = arith.constant dense<0.000000e+00> : vector<128x128xf32>
    %2 = tpu.matmul %0, %1, %cst {dimension_numbers = #tpu.dot_dimension_numbers<[1], [0], [0], [1], [0, 0, 1, 1], [], []>} : vector<128x128xbf16>, vector<128x128xbf16>, vector<128x128xf32> -> vector<128x128xf32>
    %c0_3 = arith.constant 0 : index
    %c0_4 = arith.constant 0 : index
    %3 = vector.load %arg3[%c0_3, %c0_4] : memref<1x128xf32, #tpu.memory_space<vmem>>, vector<1x128xf32>
    %4 = vector.broadcast %3 : vector<1x128xf32> to vector<128x128xf32>
    %5 = arith.addf %2, %4 : vector<128x128xf32>
    %cst_5 = arith.constant 0.000000e+00 : f32
    %6 = vector.broadcast %cst_5 : f32 to vector<128x128xf32>
    %7 = arith.maximumf %5, %6 : vector<128x128xf32>
    %8 = arith.truncf %7 : vector<128x128xf32> to vector<128x128xbf16>
    %c0_6 = arith.constant 0 : index
    %c0_7 = arith.constant 0 : index
    %9 = vector.load %arg4[%c0_6, %c0_7] : memref<128x128xbf16, #tpu.memory_space<vmem>>, vector<128x128xbf16>
    %cst_8 = arith.constant dense<0.000000e+00> : vector<128x128xf32>
    %10 = tpu.matmul %8, %9, %cst_8 {dimension_numbers = #tpu.dot_dimension_numbers<[1], [0], [0], [1], [0, 0, 1, 1], [], []>} : vector<128x128xbf16>, vector<128x128xbf16>, vector<128x128xf32> -> vector<128x128xf32>
    %c0_9 = arith.constant 0 : index
    %c0_10 = arith.constant 0 : index
    %11 = vector.load %arg5[%c0_9, %c0_10] : memref<1x128xf32, #tpu.memory_space<vmem>>, vector<1x128xf32>
    %12 = vector.broadcast %11 : vector<1x128xf32> to vector<128x128xf32>
    %13 = arith.addf %10, %12 : vector<128x128xf32>
    %cst_11 = arith.constant 0.000000e+00 : f32
    %14 = vector.broadcast %cst_11 : f32 to vector<128x128xf32>
    %15 = arith.maximumf %13, %14 : vector<128x128xf32>
    %c0_12 = arith.constant 0 : index
    %c0_13 = arith.constant 0 : index
    %16 = vector.load %arg6[%c0_12, %c0_13] : memref<1x128xf32, #tpu.memory_space<vmem>>, vector<1x128xf32>
    %17 = vector.broadcast %16 : vector<1x128xf32> to vector<128x128xf32>
    %18 = arith.mulf %15, %17 : vector<128x128xf32>
    %cst_14 = arith.constant dense<0.000000e+00> : vector<128xf32>
    %19 = vector.multi_reduction <add>, %18, %cst_14 [1] : vector<128x128xf32> to vector<128xf32>
    %20 = vector.shape_cast %19 : vector<128xf32> to vector<128x1xf32>
    %c0_15 = arith.constant 0 : index
    %c0_16 = arith.constant 0 : index
    %21 = memref.load %arg7[%c0_15, %c0_16] : memref<1x1xf32, #tpu.memory_space<smem>>
    %22 = vector.broadcast %21 : f32 to vector<128x1xf32>
    %23 = arith.addf %20, %22 : vector<128x1xf32>
    %c0_17 = arith.constant 0 : index
    %c0_18 = arith.constant 0 : index
    %24 = vector.load %arg8[%c0_17, %c0_18] : memref<128x1xf32, #tpu.memory_space<vmem>>, vector<128x1xf32>
    tpu.vector_store %arg8[%c0_17, %c0_18], %23 {strides = array<i32>} : memref<128x1xf32, #tpu.memory_space<vmem>>, vector<128x1xf32>,
    return
  }
  func.func @transform_0(%arg0: i32) -> (i32, i32) {
    %c0_i32 = arith.constant 0 : i32
    %c0_i32_0 = arith.constant 0 : i32
    return %arg0, %c0_i32 : i32, i32
  }
  func.func @transform_1(%arg0: i32) -> (i32, i32) {
    %c0_i32 = arith.constant 0 : i32
    %c0_i32_0 = arith.constant 0 : i32
    %c0_i32_1 = arith.constant 0 : i32
    return %c0_i32, %c0_i32_0 : i32, i32
  }
  func.func @transform_2(%arg0: i32) -> (i32, i32) {
    %c0_i32 = arith.constant 0 : i32
    %c0_i32_0 = arith.constant 0 : i32
    %c0_i32_1 = arith.constant 0 : i32
    return %c0_i32, %c0_i32_0 : i32, i32
  }
  func.func @transform_3(%arg0: i32) -> (i32, i32) {
    %c0_i32 = arith.constant 0 : i32
    %c0_i32_0 = arith.constant 0 : i32
    %c0_i32_1 = arith.constant 0 : i32
    return %c0_i32, %c0_i32_0 : i32, i32
  }
  func.func @transform_4(%arg0: i32) -> (i32, i32) {
    %c0_i32 = arith.constant 0 : i32
    %c0_i32_0 = arith.constant 0 : i32
    %c0_i32_1 = arith.constant 0 : i32
    return %c0_i32, %c0_i32_0 : i32, i32
  }
  func.func @transform_5(%arg0: i32) -> (i32, i32) {
    %c0_i32 = arith.constant 0 : i32
    %c0_i32_0 = arith.constant 0 : i32
    %c0_i32_1 = arith.constant 0 : i32
    return %c0_i32, %c0_i32_0 : i32, i32
  }
  func.func @transform_6(%arg0: i32) -> (i32, i32) {
    %c0_i32 = arith.constant 0 : i32
    %c0_i32_0 = arith.constant 0 : i32
    %c0_i32_1 = arith.constant 0 : i32
    return %c0_i32, %c0_i32_0 : i32, i32
  }
  func.func @transform_7(%arg0: i32) -> (i32, i32) {
    %c0_i32 = arith.constant 0 : i32
    %c0_i32_0 = arith.constant 0 : i32
    return %arg0, %c0_i32 : i32, i32
  }
}

</mosaic_0001>

<llo_original>
// kernel: tpu_custom_call.1
$region0: #{tpu_custom_call.1}
  #allocation0 [shape = 'u32[]', space=smem, size = 0x4, offset = 0x4, fixed_abs, tag = 'smem constant byte address 0x4 - core index']
  #allocation1 [shape = 'u32[72,128]{1,0:T(1,128)}', space=vmem, size = 0x9000, scoped, tag = 'internal scratch']
  #allocation2 [shape = 'f32[1,1]{1,0:T(1,128)S(6)}', space=smem, size = 0x200, scoped, tag = 'scoped memory for tpu_custom_call.1']
  %s0 = inlined_call_operand.hbm [shape: bf16[128,128], index: 0, kind: input, shape index: {}]
  %s1 = inlined_call_operand.hbm [shape: bf16[128,128], index: 1, kind: input, shape index: {}]
  %s2 = inlined_call_operand.vmem [shape: f32[1,128], index: 2, kind: input, shape index: {}]
  %s3 = inlined_call_operand.hbm [shape: bf16[128,128], index: 3, kind: input, shape index: {}]
  %s4 = inlined_call_operand.vmem [shape: f32[1,128], index: 4, kind: input, shape index: {}]
  %s5 = inlined_call_operand.vmem [shape: f32[1,128], index: 5, kind: input, shape index: {}]
  %s6 = inlined_call_operand.<no memory space> [shape: f32[1,1], index: 6, kind: input, shape index: {}]
  %s7 = inlined_call_operand.vmem [shape: f32[128,1], index: 7, kind: output, shape index: {}]
  %s8 = sld [smem:[#allocation0]]
  $region50: #{tpu_custom_call.1} parent=0
    _
  %s10 = ssub.s32 1, %s8
  %s11 = scalar_select 0, %s10, %s8
  %12 = sst [smem:[#allocation2]] %s6
  $region1: #{tpu_custom_call.1} parent=0
    #allocation3 [shape = 'u8[32768]{0}', space=vmem, size = 0x8000, scoped, tag = 'input window, operand 0, single buffered']
    #allocation4 [shape = 's32[1]{0}', space=sflag, size = 0x4, scoped, tag = 'scoped memory for tpu_custom_call.1']
    #allocation5 [shape = 'u8[32768]{0}', space=vmem, size = 0x8000, scoped, tag = 'input window, operand 1, single buffered']
    #allocation6 [shape = 's32[1]{0}', space=sflag, size = 0x4, scoped, tag = 'scoped memory for tpu_custom_call.1']
    #allocation7 [shape = 'u8[32768]{0}', space=vmem, size = 0x8000, scoped, tag = 'input window, operand 3, single buffered']
    %13 = vsyncpa [#allocation4], 0
    %14 = vsyncpa [#allocation6], 0
    // Predicated region
    $region2: #{tpu_custom_call.1} parent=1 // pred_check
      _
    $region3: #{tpu_custom_call.1} parent=1 // pred_check_branch
      %16 = sbr.rel (0) target = $region5
    $region4: #{tpu_custom_call.1} parent=1 // pred_region
      %18 = vsyncadd [#allocation4], 0
      %s19 = sshll.u32 %s0, 4
      %s20 = int_to_ptr.hbm [resolvable:$true] %s19
      %s21 = sshll.u32 [#allocation3], 4
      %s22 = int_to_ptr.vmem [resolvable:$true] %s21
      %27 = dma.hbm_to_vmem [thread:$0]  %s20, 1024, %s22, [#allocation4], 64, 64, 4
    $region5: #{tpu_custom_call.1} parent=1 // pred_fallthru
      _
    // Predicated region
    $region6: #{tpu_custom_call.1} parent=1 // pred_check
      _
    $region7: #{tpu_custom_call.1} parent=1 // pred_check_branch
      %29 = sbr.rel (0) target = $region9
    $region8: #{tpu_custom_call.1} parent=1 // pred_region
      %31 = vsyncadd [#allocation6], 0
      %s32 = sshll.u32 %s1, 4
      %s33 = int_to_ptr.hbm [resolvable:$true] %s32
      %s34 = sshll.u32 [#allocation5], 4
      %s35 = int_to_ptr.vmem [resolvable:$true] %s34
      %40 = dma.hbm_to_vmem [thread:$0]  %s33, 1024, %s35, [#allocation6], 64, 64, 4
    $region9: #{tpu_custom_call.1} parent=1 // pred_fallthru
      _
    // Predicated region
    $region10: #{tpu_custom_call.1} parent=1 // pred_check
      _
    $region11: #{tpu_custom_call.1} parent=1 // pred_check_branch
      %42 = sbr.rel (0) target = $region13
    $region12: #{tpu_custom_call.1} parent=1 // pred_region
      _
    $region13: #{tpu_custom_call.1} parent=1 // pred_fallthru
      _
    // Predicated region
    $region14: #{tpu_custom_call.1} parent=1 // pred_check
      _
    $region15: #{tpu_custom_call.1} parent=1 // pred_check_branch
      %44 = sbr.rel (0) target = $region17
    $region16: #{tpu_custom_call.1} parent=1 // pred_region
      %46 = vsyncadd [#allocation6], 0
      %s47 = sshll.u32 %s3, 4
      %s48 = int_to_ptr.hbm [resolvable:$true] %s47
      %s49 = sshll.u32 [#allocation7], 4
      %s50 = int_to_ptr.vmem [resolvable:$true] %s49
      %55 = dma.hbm_to_vmem [thread:$0]  %s48, 1024, %s50, [#allocation6], 64, 64, 4
    $region17: #{tpu_custom_call.1} parent=1 // pred_fallthru
      _
    // Predicated region
    $region18: #{tpu_custom_call.1} parent=1 // pred_check
      _
    $region19: #{tpu_custom_call.1} parent=1 // pred_check_branch
      %57 = sbr.rel (0) target = $region21
    $region20: #{tpu_custom_call.1} parent=1 // pred_region
      _
    $region21: #{tpu_custom_call.1} parent=1 // pred_fallthru
      _
    // Predicated region
    $region22: #{tpu_custom_call.1} parent=1 // pred_check
      _
    $region23: #{tpu_custom_call.1} parent=1 // pred_check_branch
      %59 = sbr.rel (0) target = $region25
    $region24: #{tpu_custom_call.1} parent=1 // pred_region
      _
    $region25: #{tpu_custom_call.1} parent=1 // pred_fallthru
      _
    // Predicated region
    $region26: #{tpu_custom_call.1} parent=1 // pred_check
      _
    $region27: #{tpu_custom_call.1} parent=1 // pred_check_branch
      %61 = sbr.rel (0) target = $region29
    $region28: #{tpu_custom_call.1} parent=1 // pred_region
      _
    $region29: #{tpu_custom_call.1} parent=1 // pred_fallthru
      _
    // Predicated region
    $region30: #{tpu_custom_call.1} parent=1 // pred_check
      _
    $region31: #{tpu_custom_call.1} parent=1 // pred_check_branch
      %63 = sbr.rel (0) target = $region33
    $region32: #{tpu_custom_call.1} parent=1 // pred_region
      %65 = dma.done [#allocation4], 1024
    $region33: #{tpu_custom_call.1} parent=1 // pred_fallthru
      _
    // Predicated region
    $region34: #{tpu_custom_call.1} parent=1 // pred_check
      _
    $region35: #{tpu_custom_call.1} parent=1 // pred_check_branch
      %67 = sbr.rel (0) target = $region37
    $region36: #{tpu_custom_call.1} parent=1 // pred_region
      %69 = dma.done [#allocation6], 1024
    $region37: #{tpu_custom_call.1} parent=1 // pred_fallthru
      _
    // Predicated region
    $region38: #{tpu_custom_call.1} parent=1 // pred_check
      _
    $region39: #{tpu_custom_call.1} parent=1 // pred_check_branch
      %71 = sbr.rel (0) target = $region41
    $region40: #{tpu_custom_call.1} parent=1 // pred_region
      %73 = dma.done [#allocation6], 1024
    $region41: #{tpu_custom_call.1} parent=1 // pred_fallthru
      _
    %v74 = vld [vmem:[#allocation3] sm:$0xf]
    %v75 = vld [vmem:[#allocation3 + $0x4] sm:$0xf]
    %v76 = vld [vmem:[#allocation3 + $0x8] sm:$0xf]
    %v77 = vld [vmem:[#allocation3 + $0xc] sm:$0xf]
    %v78 = vld [vmem:[#allocation3 + $0x10] sm:$0xf]
    %v79 = vld [vmem:[#allocation3 + $0x14] sm:$0xf]
    %v80 = vld [vmem:[#allocation3 + $0x18] sm:$0xf]
    %v81 = vld [vmem:[#allocation3 + $0x1c] sm:$0xf]
    %v82 = vld [vmem:[#allocation3 + $0x20] sm:$0xf]
    %v83 = vld [vmem:[#allocation3 + $0x24] sm:$0xf]
    %v84 = vld [vmem:[#allocation3 + $0x28] sm:$0xf]
    %v85 = vld [vmem:[#allocation3 + $0x2c] sm:$0xf]
    %v86 = vld [vmem:[#allocation3 + $0x30] sm:$0xf]
    %v87 = vld [vmem:[#allocation3 + $0x34] sm:$0xf]
    %v88 = vld [vmem:[#allocation3 + $0x38] sm:$0xf]
    %v89 = vld [vmem:[#allocation3 + $0x3c] sm:$0xf]
    %v90 = vld [vmem:[#allocation5] sm:$0xf]
    %v91 = vld [vmem:[#allocation5 + $0x4] sm:$0xf]
    %v92 = vld [vmem:[#allocation5 + $0x8] sm:$0xf]
    %v93 = vld [vmem:[#allocation5 + $0xc] sm:$0xf]
    %v94 = vld [vmem:[#allocation5 + $0x10] sm:$0xf]
    %v95 = vld [vmem:[#allocation5 + $0x14] sm:$0xf]
    %v96 = vld [vmem:[#allocation5 + $0x18] sm:$0xf]
    %v97 = vld [vmem:[#allocation5 + $0x1c] sm:$0xf]
    %v98 = vld [vmem:[#allocation5 + $0x20] sm:$0xf]
    %v99 = vld [vmem:[#allocation5 + $0x24] sm:$0xf]
    %v100 = vld [vmem:[#allocation5 + $0x28] sm:$0xf]
    %v101 = vld [vmem:[#allocation5 + $0x2c] sm:$0xf]
    %v102 = vld [vmem:[#allocation5 + $0x30] sm:$0xf]
    %v103 = vld [vmem:[#allocation5 + $0x34] sm:$0xf]
    %v104 = vld [vmem:[#allocation5 + $0x38] sm:$0xf]
    %v105 = vld [vmem:[#allocation5 + $0x3c] sm:$0xf]
    %v106 = vld [vmem:[%s2] sm:$0x1]
    %v108 = vperm.slane %v106, 0
    %v126 = vunpack.c.l.b16 %v74
    %v127 = vunpack.c.l.b16 %v75
    %v128 = vunpack.c.l.b16 %v76
    %v129 = vunpack.c.l.b16 %v77
    %v130 = vunpack.c.l.b16 %v78
    %v131 = vunpack.c.l.b16 %v79
    %v132 = vunpack.c.l.b16 %v80
    %v133 = vunpack.c.l.b16 %v81
    %v134 = vunpack.c.l.b16 %v82
    %v135 = vunpack.c.l.b16 %v83
    %v136 = vunpack.c.l.b16 %v84
    %v137 = vunpack.c.l.b16 %v85
    %v138 = vunpack.c.l.b16 %v86
    %v139 = vunpack.c.l.b16 %v87
    %v140 = vunpack.c.l.b16 %v88
    %v141 = vunpack.c.l.b16 %v89
    %v142 = vpack.c.b16 %v127, %v126
    %v143 = vpack.c.b16 %v129, %v128
    %v144 = vpack.c.b16 %v131, %v130
    %v145 = vpack.c.b16 %v133, %v132
    %v146 = vpack.c.b16 %v135, %v134
    %v147 = vpack.c.b16 %v137, %v136
    %v148 = vpack.c.b16 %v139, %v138
    %v149 = vpack.c.b16 %v141, %v140
    %v174 = vunpack.c.l.b16 %v90
    %v175 = vunpack.c.l.b16 %v91
    %v176 = vunpack.c.l.b16 %v92
    %v177 = vunpack.c.l.b16 %v93
    %v178 = vunpack.c.l.b16 %v94
    %v179 = vunpack.c.l.b16 %v95
    %v180 = vunpack.c.l.b16 %v96
    %v181 = vunpack.c.l.b16 %v97
    %v182 = vunpack.c.l.b16 %v98
    %v183 = vunpack.c.l.b16 %v99
    %v184 = vunpack.c.l.b16 %v100
    %v185 = vunpack.c.l.b16 %v101
    %v186 = vunpack.c.l.b16 %v102
    %v187 = vunpack.c.l.b16 %v103
    %v188 = vunpack.c.l.b16 %v104
    %v189 = vunpack.c.l.b16 %v105
    %v190 = vpack.c.b16 %v175, %v174
    %v191 = vpack.c.b16 %v177, %v176
    %v192 = vpack.c.b16 %v179, %v178
    %v193 = vpack.c.b16 %v181, %v180
    %v194 = vpack.c.b16 %v183, %v182
    %v195 = vpack.c.b16 %v185, %v184
    %v196 = vpack.c.b16 %v187, %v186
    %v197 = vpack.c.b16 %v189, %v188
    %206 = vmatpush.bf16.msra.mxu0 %v197
    %207 = vmatpush.bf16.msra.mxu0 %v196
    %208 = vmatpush.bf16.msra.mxu0 %v195
    %209 = vmatpush.bf16.msra.mxu0 %v194
    %210 = vmatpush.bf16.msra.mxu0 %v193
    %211 = vmatpush.bf16.msra.mxu0 %v192
    %212 = vmatpush.bf16.msra.mxu0 %v191
    %213 = vmatpush.bf16.msra.mxu0 %v190
    %214 = vmatmul.bf16.gmra.mxu0 %v142
    %v215 = vpop.f32.mrf.mxu0
    %v216 = vadd.f32 %v108, %v215
    %v217 = vpop.f32.mrf.mxu0
    %v218 = vadd.f32 %v108, %v217
    %219 = vmatmul.bf16.gmra.mxu0 %v143
    %v220 = vpop.f32.mrf.mxu0
    %v221 = vadd.f32 %v108, %v220
    %v222 = vpop.f32.mrf.mxu0
    %v223 = vadd.f32 %v108, %v222
    %224 = vmatmul.bf16.gmra.mxu0 %v144
    %v225 = vpop.f32.mrf.mxu0
    %v226 = vadd.f32 %v108, %v225
    %v227 = vpop.f32.mrf.mxu0
    %v228 = vadd.f32 %v108, %v227
    %229 = vmatmul.bf16.gmra.mxu0 %v145
    %v230 = vpop.f32.mrf.mxu0
    %v231 = vadd.f32 %v108, %v230
    %v232 = vpop.f32.mrf.mxu0
    %v233 = vadd.f32 %v108, %v232
    %234 = vmatmul.bf16.gmra.mxu0 %v146
    %v235 = vpop.f32.mrf.mxu0
    %v236 = vadd.f32 %v108, %v235
    %v237 = vpop.f32.mrf.mxu0
    %v238 = vadd.f32 %v108, %v237
    %239 = vmatmul.bf16.gmra.mxu0 %v147
    %v240 = vpop.f32.mrf.mxu0
    %v241 = vadd.f32 %v108, %v240
    %v242 = vpop.f32.mrf.mxu0
    %v243 = vadd.f32 %v108, %v242
    %244 = vmatmul.bf16.gmra.mxu0 %v148
    %v245 = vpop.f32.mrf.mxu0
    %v246 = vadd.f32 %v108, %v245
    %v247 = vpop.f32.mrf.mxu0
    %v248 = vadd.f32 %v108, %v247
    %249 = vmatmul.bf16.gmra.mxu0 %v149
    %v250 = vpop.f32.mrf.mxu0
    %v251 = vadd.f32 %v108, %v250
    %v252 = vpop.f32.mrf.mxu0
    %v253 = vadd.f32 %v108, %v252
    %254 = vdwg.mxu0
    %v255 = vmax.f32 %v216, 0.0
    %v256 = vmax.f32 %v218, 0.0
    %v257 = vmax.f32 %v221, 0.0
    %v258 = vmax.f32 %v223, 0.0
    %v259 = vmax.f32 %v226, 0.0
    %v260 = vmax.f32 %v228, 0.0
    %v261 = vmax.f32 %v231, 0.0
    %v262 = vmax.f32 %v233, 0.0
    %v263 = vmax.f32 %v236, 0.0
    %v264 = vmax.f32 %v238, 0.0
    %v265 = vmax.f32 %v241, 0.0
    %v266 = vmax.f32 %v243, 0.0
    %v267 = vmax.f32 %v246, 0.0
    %v268 = vmax.f32 %v248, 0.0
    %v269 = vmax.f32 %v251, 0.0
    %v270 = vmax.f32 %v253, 0.0
    %v271 = vpack.c.bf16 %v256, %v255
    %v272 = vpack.c.bf16 %v258, %v257
    %v273 = vpack.c.bf16 %v260, %v259
    %v274 = vpack.c.bf16 %v262, %v261
    %v275 = vpack.c.bf16 %v264, %v263
    %v276 = vpack.c.bf16 %v266, %v265
    %v277 = vpack.c.bf16 %v268, %v267
    %v278 = vpack.c.bf16 %v270, %v269
    %v279 = vld [vmem:[#allocation7] sm:$0xf]
    %v280 = vld [vmem:[#allocation7 + $0x4] sm:$0xf]
    %v281 = vld [vmem:[#allocation7 + $0x8] sm:$0xf]
    %v282 = vld [vmem:[#allocation7 + $0xc] sm:$0xf]
    %v283 = vld [vmem:[#allocation7 + $0x10] sm:$0xf]
    %v284 = vld [vmem:[#allocation7 + $0x14] sm:$0xf]
    %v285 = vld [vmem:[#allocation7 + $0x18] sm:$0xf]
    %v286 = vld [vmem:[#allocation7 + $0x1c] sm:$0xf]
    %v287 = vld [vmem:[#allocation7 + $0x20] sm:$0xf]
    %v288 = vld [vmem:[#allocation7 + $0x24] sm:$0xf]
    %v289 = vld [vmem:[#allocation7 + $0x28] sm:$0xf]
    %v290 = vld [vmem:[#allocation7 + $0x2c] sm:$0xf]
    %v291 = vld [vmem:[#allocation7 + $0x30] sm:$0xf]
    %v292 = vld [vmem:[#allocation7 + $0x34] sm:$0xf]
    %v293 = vld [vmem:[#allocation7 + $0x38] sm:$0xf]
    %v294 = vld [vmem:[#allocation7 + $0x3c] sm:$0xf]
    %v295 = vld [vmem:[%s4] sm:$0x1]
    %v297 = vperm.slane %v295, 0
    %v315 = vunpack.c.l.b16 %v279
    %v316 = vunpack.c.l.b16 %v280
    %v317 = vunpack.c.l.b16 %v281
    %v318 = vunpack.c.l.b16 %v282
    %v319 = vunpack.c.l.b16 %v283
    %v320 = vunpack.c.l.b16 %v284
    %v321 = vunpack.c.l.b16 %v285
    %v322 = vunpack.c.l.b16 %v286
    %v323 = vunpack.c.l.b16 %v287
    %v324 = vunpack.c.l.b16 %v288
    %v325 = vunpack.c.l.b16 %v289
    %v326 = vunpack.c.l.b16 %v290
    %v327 = vunpack.c.l.b16 %v291
    %v328 = vunpack.c.l.b16 %v292
    %v329 = vunpack.c.l.b16 %v293
    %v330 = vunpack.c.l.b16 %v294
    %v331 = vpack.c.b16 %v316, %v315
    %v332 = vpack.c.b16 %v318, %v317
    %v333 = vpack.c.b16 %v320, %v319
    %v334 = vpack.c.b16 %v322, %v321
    %v335 = vpack.c.b16 %v324, %v323
    %v336 = vpack.c.b16 %v326, %v325
    %v337 = vpack.c.b16 %v328, %v327
    %v338 = vpack.c.b16 %v330, %v329
    %347 = vmatpush.bf16.msra.mxu0 %v338
    %348 = vmatpush.bf16.msra.mxu0 %v337
    %349 = vmatpush.bf16.msra.mxu0 %v336
    %350 = vmatpush.bf16.msra.mxu0 %v335
    %351 = vmatpush.bf16.msra.mxu0 %v334
    %352 = vmatpush.bf16.msra.mxu0 %v333
    %353 = vmatpush.bf16.msra.mxu0 %v332
    %354 = vmatpush.bf16.msra.mxu0 %v331
    %355 = vmatmul.bf16.gmra.mxu0 %v271
    %v356 = vpop.f32.mrf.mxu0
    %v357 = vadd.f32 %v297, %v356
    %v358 = vpop.f32.mrf.mxu0
    %v359 = vadd.f32 %v297, %v358
    %360 = vmatmul.bf16.gmra.mxu0 %v272
    %v361 = vpop.f32.mrf.mxu0
    %v362 = vadd.f32 %v297, %v361
    %v363 = vpop.f32.mrf.mxu0
    %v364 = vadd.f32 %v297, %v363
    %365 = vmatmul.bf16.gmra.mxu0 %v273
    %v366 = vpop.f32.mrf.mxu0
    %v367 = vadd.f32 %v297, %v366
    %v368 = vpop.f32.mrf.mxu0
    %v369 = vadd.f32 %v297, %v368
    %370 = vmatmul.bf16.gmra.mxu0 %v274
    %v371 = vpop.f32.mrf.mxu0
    %v372 = vadd.f32 %v297, %v371
    %v373 = vpop.f32.mrf.mxu0
    %v374 = vadd.f32 %v297, %v373
    %375 = vmatmul.bf16.gmra.mxu0 %v275
    %v376 = vpop.f32.mrf.mxu0
    %v377 = vadd.f32 %v297, %v376
    %v378 = vpop.f32.mrf.mxu0
    %v379 = vadd.f32 %v297, %v378
    %380 = vmatmul.bf16.gmra.mxu0 %v276
    %v381 = vpop.f32.mrf.mxu0
    %v382 = vadd.f32 %v297, %v381
    %v383 = vpop.f32.mrf.mxu0
    %v384 = vadd.f32 %v297, %v383
    %385 = vmatmul.bf16.gmra.mxu0 %v277
    %v386 = vpop.f32.mrf.mxu0
    %v387 = vadd.f32 %v297, %v386
    %v388 = vpop.f32.mrf.mxu0
    %v389 = vadd.f32 %v297, %v388
    %390 = vmatmul.bf16.gmra.mxu0 %v278
    %v391 = vpop.f32.mrf.mxu0
    %v392 = vadd.f32 %v297, %v391
    %v393 = vpop.f32.mrf.mxu0
    %v394 = vadd.f32 %v297, %v393
    %395 = vdwg.mxu0
    %v396 = vmax.f32 %v357, 0.0
    %v397 = vmax.f32 %v359, 0.0
    %v398 = vmax.f32 %v362, 0.0
    %v399 = vmax.f32 %v364, 0.0
    %v400 = vmax.f32 %v367, 0.0
    %v401 = vmax.f32 %v369, 0.0
    %v402 = vmax.f32 %v372, 0.0
    %v403 = vmax.f32 %v374, 0.0
    %v404 = vmax.f32 %v377, 0.0
    %v405 = vmax.f32 %v379, 0.0
    %v406 = vmax.f32 %v382, 0.0
    %v407 = vmax.f32 %v384, 0.0
    %v408 = vmax.f32 %v387, 0.0
    %v409 = vmax.f32 %v389, 0.0
    %v410 = vmax.f32 %v392, 0.0
    %v411 = vmax.f32 %v394, 0.0
    %v412 = vld [vmem:[%s5] sm:$0x1]
    %v414 = vperm.slane %v412, 0
    %v416 = vmul.f32 %v396, %v414
    %v417 = vmul.f32 %v397, %v414
    %v418 = vmul.f32 %v398, %v414
    %v419 = vmul.f32 %v399, %v414
    %v420 = vmul.f32 %v400, %v414
    %v421 = vmul.f32 %v401, %v414
    %v422 = vmul.f32 %v402, %v414
    %v423 = vmul.f32 %v403, %v414
    %v424 = vmul.f32 %v404, %v414
    %v425 = vmul.f32 %v405, %v414
    %v426 = vmul.f32 %v406, %v414
    %v427 = vmul.f32 %v407, %v414
    %v428 = vmul.f32 %v408, %v414
    %v429 = vmul.f32 %v409, %v414
    %v430 = vmul.f32 %v410, %v414
    %v431 = vmul.f32 %v411, %v414
    %432 = vadd.xlane.f32.xlu0 %v416
    %v433 = vpop.xlane.xlu0 %432
    %434 = vadd.xlane.f32.xlu0 %v417
    %v435 = vpop.xlane.xlu0 %434
    %436 = vadd.xlane.f32.xlu0 %v418
    %v437 = vpop.xlane.xlu0 %436
    %438 = vadd.xlane.f32.xlu0 %v419
    %v439 = vpop.xlane.xlu0 %438
    %440 = vadd.xlane.f32.xlu0 %v420
    %v441 = vpop.xlane.xlu0 %440
    %442 = vadd.xlane.f32.xlu0 %v421
    %v443 = vpop.xlane.xlu0 %442
    %444 = vadd.xlane.f32.xlu0 %v422
    %v445 = vpop.xlane.xlu0 %444
    %446 = vadd.xlane.f32.xlu0 %v423
    %v447 = vpop.xlane.xlu0 %446
    %448 = vadd.xlane.f32.xlu0 %v424
    %v449 = vpop.xlane.xlu0 %448
    %450 = vadd.xlane.f32.xlu0 %v425
    %v451 = vpop.xlane.xlu0 %450
    %452 = vadd.xlane.f32.xlu0 %v426
    %v453 = vpop.xlane.xlu0 %452
    %454 = vadd.xlane.f32.xlu0 %v427
    %v455 = vpop.xlane.xlu0 %454
    %456 = vadd.xlane.f32.xlu0 %v428
    %v457 = vpop.xlane.xlu0 %456
    %458 = vadd.xlane.f32.xlu0 %v429
    %v459 = vpop.xlane.xlu0 %458
    %460 = vadd.xlane.f32.xlu0 %v430
    %v461 = vpop.xlane.xlu0 %460
    %462 = vadd.xlane.f32.xlu0 %v431
    %v463 = vpop.xlane.xlu0 %462
    %s464 = sld [smem:[#allocation2]]
    %v465 = vstv %s464
    %v466 = vadd.f32 %v433, %v465
    %v467 = vadd.f32 %v435, %v465
    %v468 = vadd.f32 %v437, %v465
    %v469 = vadd.f32 %v439, %v465
    %v470 = vadd.f32 %v441, %v465
    %v471 = vadd.f32 %v443, %v465
    %v472 = vadd.f32 %v445, %v465
    %v473 = vadd.f32 %v447, %v465
    %v474 = vadd.f32 %v449, %v465
    %v475 = vadd.f32 %v451, %v465
    %v476 = vadd.f32 %v453, %v465
    %v477 = vadd.f32 %v455, %v465
    %v478 = vadd.f32 %v457, %v465
    %v479 = vadd.f32 %v459, %v465
    %v480 = vadd.f32 %v461, %v465
    %v481 = vadd.f32 %v463, %v465
    %vm482 = vcmask 7168
    %483 = vst.msk [vmem:[%s7] sm:$0xff] %vm482, %v466
    %484 = vst.msk [vmem:[%s7 + $0x8] sm:$0xff] %vm482, %v467
    %485 = vst.msk [vmem:[%s7 + $0x10] sm:$0xff] %vm482, %v468
    %486 = vst.msk [vmem:[%s7 + $0x18] sm:$0xff] %vm482, %v469
    %487 = vst.msk [vmem:[%s7 + $0x20] sm:$0xff] %vm482, %v470
    %488 = vst.msk [vmem:[%s7 + $0x28] sm:$0xff] %vm482, %v471
    %489 = vst.msk [vmem:[%s7 + $0x30] sm:$0xff] %vm482, %v472
    %490 = vst.msk [vmem:[%s7 + $0x38] sm:$0xff] %vm482, %v473
    %491 = vst.msk [vmem:[%s7 + $0x40] sm:$0xff] %vm482, %v474
    %492 = vst.msk [vmem:[%s7 + $0x48] sm:$0xff] %vm482, %v475
    %493 = vst.msk [vmem:[%s7 + $0x50] sm:$0xff] %vm482, %v476
    %494 = vst.msk [vmem:[%s7 + $0x58] sm:$0xff] %vm482, %v477
    %495 = vst.msk [vmem:[%s7 + $0x60] sm:$0xff] %vm482, %v478
    %496 = vst.msk [vmem:[%s7 + $0x68] sm:$0xff] %vm482, %v479
    %497 = vst.msk [vmem:[%s7 + $0x70] sm:$0xff] %vm482, %v480
    %498 = vst.msk [vmem:[%s7 + $0x78] sm:$0xff] %vm482, %v481
    // Predicated region
    $region42: #{tpu_custom_call.1} parent=1 // pred_check
      _
    $region43: #{tpu_custom_call.1} parent=1 // pred_check_branch
      %500 = sbr.rel (0) target = $region45
    $region44: #{tpu_custom_call.1} parent=1 // pred_region
      _
    $region45: #{tpu_custom_call.1} parent=1 // pred_fallthru
      _
    // Predicated region
    $region46: #{tpu_custom_call.1} parent=1 // pred_check
      _
    $region47: #{tpu_custom_call.1} parent=1 // pred_check_branch
      %502 = sbr.rel (0) target = $region49
    $region48: #{tpu_custom_call.1} parent=1 // pred_region
      _
    $region49: #{tpu_custom_call.1} parent=1 // pred_fallthru
      _
    %503 = vsyncpa [#allocation4], 1
    %504 = vsyncpa [#allocation6], 1

</llo_original>
